<compile_context>
chip_gen: v5e
topology: v5e:2x2
jax: 0.10.0
libtpu: 0.0.40
codegen_flags: <defaults>
</compile_context>

<pallas_src>
import functools

import jax
import jax.numpy as jnp
from jax import lax
from jax.experimental import pallas as pl
from jax.experimental.pallas import tpu as pltpu


# ----------------------------------------------------------------------------
# Primary kernel: strip-level relayout + dense stores.
# ----------------------------------------------------------------------------
def _patchify_dense_kernel(x_ref, o_ref, *, h, w, ph, pw):
    """x_ref: (Bblk, C, H, W) -> o_ref: (Bblk, C, h, w, ph*pw).

    o_ref[b, c, i, j, p*pw + q] = x_ref[b, c, i*ph + p, j*pw + q]
    """
    bb, cc, _, _ = x_ref.shape

    def strip_body(i, carry):
        r0 = pl.multiple_of(i * ph, ph)
        # Full-width, lane-dense load of one row of patches: (Bblk, C, ph, W).
        strip = x_ref[:, :, pl.ds(r0, ph), :]
        strip = strip.reshape(bb, cc, ph, w, pw)          # split W -> (w, pw)
        strip = jnp.transpose(strip, (0, 1, 3, 2, 4))     # (Bblk, C, w, ph, pw)
        # One dense (w, ph*pw) store per strip (vs. w masked pw-wide stores).
        o_ref[:, :, i, :, :] = strip.reshape(bb, cc, w, ph * pw)
        return carry

    lax.fori_loop(0, h, strip_body, 0, unroll=2)


def _patchify_dense(x, patch_size, *, target_block_bytes=2 << 20):
    ph, pw = patch_size
    B, C, H, W = x.shape
    h, w = H // ph, W // pw

    # Batch-block pick: ~target_block_bytes of input per grid step. In + out
    # blocks are each double-buffered, so total VMEM ~= 4x this (<= 8 MiB),
    # safely under the 16 MiB scoped default on v5e and 32 MiB on v6e/v7x.
    # Keep >= 2 grid steps whenever B >= 2 so v7x megacore sharding applies.
    plane_bytes = C * H * W * x.dtype.itemsize
    bblk = max(1, min(B, target_block_bytes // max(plane_bytes, 1)))
    if B >= 2:
        bblk = min(bblk, B // 2)
    while B % bblk:
        bblk -= 1
    nb = B // bblk

    kernel = functools.partial(_patchify_dense_kernel, h=h, w=w, ph=ph, pw=pw)
    nbytes = x.size * x.dtype.itemsize

    out = pl.pallas_call(
        kernel,
        out_shape=jax.ShapeDtypeStruct((B, C, h, w, ph * pw), x.dtype),
        grid=(nb,),
        in_specs=[
            # Trailing block dims equal the full array dims -> (8, 128) rule OK
            # for any image size, and the HBM<->VMEM DMAs are fully contiguous.
            pl.BlockSpec((bblk, C, H, W), lambda b: (b, 0, 0, 0)),
        ],
        out_specs=pl.BlockSpec((bblk, C, h, w, ph * pw),
                               lambda b: (b, 0, 0, 0, 0)),
        compiler_params=pltpu.CompilerParams(
            dimension_semantics=("parallel",)),
        cost_estimate=pl.CostEstimate(
            flops=0, transcendentals=0, bytes_accessed=2 * nbytes),
    )(x)
    # Contiguous (free) reshape back to the module's output layout:
    # (B, C, h, w, ph*pw) -> (B, C, h*w, ph, pw).
    return out.reshape(B, C, h * w, ph, pw)


# ----------------------------------------------------------------------------
# Fallback kernel (previously validated): static slices only, per (b, c) plane.
# Only used if the Mosaic build in use cannot lower the strip relayout above.
# ----------------------------------------------------------------------------
def _patchify_plane_kernel(x_ref, o_ref, *, h, w, ph, pw):
    # x_ref: (1, 1, H, W); o_ref: (1, 1, h*w, ph, pw)
    for i in range(h):
        rows = x_ref[0, 0, i * ph:(i + 1) * ph, :]
        for j in range(w):
            o_ref[0, 0, i * w + j, :, :] = rows[:, j * pw:(j + 1) * pw]


def _patchify_fallback(x, patch_size):
    ph, pw = patch_size
    B, C, H, W = x.shape
    h, w = H // ph, W // pw
    kernel = functools.partial(_patchify_plane_kernel, h=h, w=w, ph=ph, pw=pw)
    nbytes = x.size * x.dtype.itemsize
    return pl.pallas_call(
        kernel,
        out_shape=jax.ShapeDtypeStruct((B, C, h * w, ph, pw), x.dtype),
        grid=(B, C),
        in_specs=[pl.BlockSpec((1, 1, H, W), lambda b, c: (b, c, 0, 0))],
        out_specs=pl.BlockSpec((1, 1, h * w, ph, pw),
                               lambda b, c: (b, c, 0, 0, 0)),
        compiler_params=pltpu.CompilerParams(
            dimension_semantics=("parallel", "parallel")),
        cost_estimate=pl.CostEstimate(
            flops=0, transcendentals=0, bytes_accessed=2 * nbytes),
    )(x)


def patchify(x, patch_size):
    """x: (B, C, H, W) NCHW -> (B, C, h*w, ph, pw); same as the PyTorch module."""
    ph, pw = patch_size
    B, C, H, W = x.shape
    assert H % ph == 0 and W % pw == 0, "spatial dims must be divisible by patch size"
    try:
        out = _patchify_dense(x, patch_size)
        return jax.block_until_ready(out)
    except Exception:
        # Identical semantics; only differs in store granularity / grid layout.
        return _patchify_fallback(x, patch_size)


if __name__ == "__main__":
    # Small shapes consistent with the module's forward.
    B, C, H, W = 2, 4, 16, 16
    patch_size = (4, 4)
    ph, pw = patch_size
    h, w = H // ph, W // pw

    x = jax.random.normal(jax.random.PRNGKey(0), (B, C, H, W), dtype=jnp.float32)

    out = patchify(x, patch_size)
    out = jax.block_until_ready(out)

    # Reference: einops 'b c (h ph) (w pw) -> b c (h w) ph pw' in plain JAX.
    ref = x.reshape(B, C, h, ph, w, pw).transpose(0, 1, 2, 4, 3, 5)
    ref = ref.reshape(B, C, h * w, ph, pw)

    assert out.shape == (B, C, h * w, ph, pw)
    assert jnp.array_equal(out, ref), "mismatch vs reference rearrange"

    print("KERNEL_OK")
</pallas_src>

<mosaic_0001>
module attributes {stable_mosaic.version = 11 : i64} {
  func.func @_patchify_plane_kernel(%arg0: i32, %arg1: i32, %arg2: memref<1x1x16x16xf32, #tpu.memory_space<vmem>>, %arg3: memref<1x1x16x4x4xf32, #tpu.memory_space<vmem>>) attributes {dimension_semantics = [#tpu.dimension_semantics<parallel>, #tpu.dimension_semantics<parallel>], iteration_bounds = array<i64: 2, 4>, scalar_prefetch = 0 : i64, scratch_operands = 0 : i64, tpu.core_type = #tpu.core_type<tc>, window_params = [{transform_indices = @transform_0, window_bounds = array<i64: 1, 1, 16, 16>}, {transform_indices = @transform_1, window_bounds = array<i64: 1, 1, 16, 4, 4>}]} {
    %c0 = arith.constant 0 : index
    %c0_0 = arith.constant 0 : index
    %c0_1 = arith.constant 0 : index
    %c0_2 = arith.constant 0 : index
    %0 = vector.load %arg2[%c0, %c0_0, %c0_1, %c0_2] : memref<1x1x16x16xf32, #tpu.memory_space<vmem>>, vector<1x1x4x16xf32>
    %1 = vector.shape_cast %0 : vector<1x1x4x16xf32> to vector<4x16xf32>
    %2 = vector.extract_strided_slice %1 {offsets = [0, 0], sizes = [4, 4], strides = [1, 1]} : vector<4x16xf32> to vector<4x4xf32>
    %c0_3 = arith.constant 0 : index
    %c0_4 = arith.constant 0 : index
    %c0_5 = arith.constant 0 : index
    %c0_6 = arith.constant 0 : index
    %c0_7 = arith.constant 0 : index
    %3 = vector.load %arg3[%c0_3, %c0_4, %c0_5, %c0_6, %c0_7] : memref<1x1x16x4x4xf32, #tpu.memory_space<vmem>>, vector<1x1x1x4x4xf32>
    %4 = vector.shape_cast %3 : vector<1x1x1x4x4xf32> to vector<4x4xf32>
    %5 = vector.shape_cast %2 : vector<4x4xf32> to vector<1x1x1x4x4xf32>
    tpu.vector_store %arg3[%c0_3, %c0_4, %c0_5, %c0_6, %c0_7], %5 {strides = array<i32>} : memref<1x1x16x4x4xf32, #tpu.memory_space<vmem>>, vector<1x1x1x4x4xf32>,
    %6 = vector.extract_strided_slice %1 {offsets = [0, 4], sizes = [4, 4], strides = [1, 1]} : vector<4x16xf32> to vector<4x4xf32>
    %c0_8 = arith.constant 0 : index
    %c0_9 = arith.constant 0 : index
    %c1 = arith.constant 1 : index
    %c0_10 = arith.constant 0 : index
    %c0_11 = arith.constant 0 : index
    %7 = vector.load %arg3[%c0_8, %c0_9, %c1, %c0_10, %c0_11] : memref<1x1x16x4x4xf32, #tpu.memory_space<vmem>>, vector<1x1x1x4x4xf32>
    %8 = vector.shape_cast %7 : vector<1x1x1x4x4xf32> to vector<4x4xf32>
    %9 = vector.shape_cast %6 : vector<4x4xf32> to vector<1x1x1x4x4xf32>
    tpu.vector_store %arg3[%c0_8, %c0_9, %c1, %c0_10, %c0_11], %9 {strides = array<i32>} : memref<1x1x16x4x4xf32, #tpu.memory_space<vmem>>, vector<1x1x1x4x4xf32>,
    %10 = vector.extract_strided_slice %1 {offsets = [0, 8], sizes = [4, 4], strides = [1, 1]} : vector<4x16xf32> to vector<4x4xf32>
    %c0_12 = arith.constant 0 : index
    %c0_13 = arith.constant 0 : index
    %c2 = arith.constant 2 : index
    %c0_14 = arith.constant 0 : index
    %c0_15 = arith.constant 0 : index
    %11 = vector.load %arg3[%c0_12, %c0_13, %c2, %c0_14, %c0_15] : memref<1x1x16x4x4xf32, #tpu.memory_space<vmem>>, vector<1x1x1x4x4xf32>
    %12 = vector.shape_cast %11 : vector<1x1x1x4x4xf32> to vector<4x4xf32>
    %13 = vector.shape_cast %10 : vector<4x4xf32> to vector<1x1x1x4x4xf32>
    tpu.vector_store %arg3[%c0_12, %c0_13, %c2, %c0_14, %c0_15], %13 {strides = array<i32>} : memref<1x1x16x4x4xf32, #tpu.memory_space<vmem>>, vector<1x1x1x4x4xf32>,
    %14 = vector.extract_strided_slice %1 {offsets = [0, 12], sizes = [4, 4], strides = [1, 1]} : vector<4x16xf32> to vector<4x4xf32>
    %c0_16 = arith.constant 0 : index
    %c0_17 = arith.constant 0 : index
    %c3 = arith.constant 3 : index
    %c0_18 = arith.constant 0 : index
    %c0_19 = arith.constant 0 : index
    %15 = vector.load %arg3[%c0_16, %c0_17, %c3, %c0_18, %c0_19] : memref<1x1x16x4x4xf32, #tpu.memory_space<vmem>>, vector<1x1x1x4x4xf32>
    %16 = vector.shape_cast %15 : vector<1x1x1x4x4xf32> to vector<4x4xf32>
    %17 = vector.shape_cast %14 : vector<4x4xf32> to vector<1x1x1x4x4xf32>
    tpu.vector_store %arg3[%c0_16, %c0_17, %c3, %c0_18, %c0_19], %17 {strides = array<i32>} : memref<1x1x16x4x4xf32, #tpu.memory_space<vmem>>, vector<1x1x1x4x4xf32>,
    %c0_20 = arith.constant 0 : index
    %c0_21 = arith.constant 0 : index
    %c4 = arith.constant 4 : index
    %c0_22 = arith.constant 0 : index
    %18 = vector.load %arg2[%c0_20, %c0_21, %c4, %c0_22] : memref<1x1x16x16xf32, #tpu.memory_space<vmem>>, vector<1x1x4x16xf32>
    %19 = vector.shape_cast %18 : vector<1x1x4x16xf32> to vector<4x16xf32>
    %20 = vector.extract_strided_slice %19 {offsets = [0, 0], sizes = [4, 4], strides = [1, 1]} : vector<4x16xf32> to vector<4x4xf32>
    %c0_23 = arith.constant 0 : index
    %c0_24 = arith.constant 0 : index
    %c4_25 = arith.constant 4 : index
    %c0_26 = arith.constant 0 : index
    %c0_27 = arith.constant 0 : index
    %21 = vector.load %arg3[%c0_23, %c0_24, %c4_25, %c0_26, %c0_27] : memref<1x1x16x4x4xf32, #tpu.memory_space<vmem>>, vector<1x1x1x4x4xf32>
    %22 = vector.shape_cast %21 : vector<1x1x1x4x4xf32> to vector<4x4xf32>
    %23 = vector.shape_cast %20 : vector<4x4xf32> to vector<1x1x1x4x4xf32>
    tpu.vector_store %arg3[%c0_23, %c0_24, %c4_25, %c0_26, %c0_27], %23 {strides = array<i32>} : memref<1x1x16x4x4xf32, #tpu.memory_space<vmem>>, vector<1x1x1x4x4xf32>,
    %24 = vector.extract_strided_slice %19 {offsets = [0, 4], sizes = [4, 4], strides = [1, 1]} : vector<4x16xf32> to vector<4x4xf32>
    %c0_28 = arith.constant 0 : index
    %c0_29 = arith.constant 0 : index
    %c5 = arith.constant 5 : index
    %c0_30 = arith.constant 0 : index
    %c0_31 = arith.constant 0 : index
    %25 = vector.load %arg3[%c0_28, %c0_29, %c5, %c0_30, %c0_31] : memref<1x1x16x4x4xf32, #tpu.memory_space<vmem>>, vector<1x1x1x4x4xf32>
    %26 = vector.shape_cast %25 : vector<1x1x1x4x4xf32> to vector<4x4xf32>
    %27 = vector.shape_cast %24 : vector<4x4xf32> to vector<1x1x1x4x4xf32>
    tpu.vector_store %arg3[%c0_28, %c0_29, %c5, %c0_30, %c0_31], %27 {strides = array<i32>} : memref<1x1x16x4x4xf32, #tpu.memory_space<vmem>>, vector<1x1x1x4x4xf32>,
    %28 = vector.extract_strided_slice %19 {offsets = [0, 8], sizes = [4, 4], strides = [1, 1]} : vector<4x16xf32> to vector<4x4xf32>
    %c0_32 = arith.constant 0 : index
    %c0_33 = arith.constant 0 : index
    %c6 = arith.constant 6 : index
    %c0_34 = arith.constant 0 : index
    %c0_35 = arith.constant 0 : index
    %29 = vector.load %arg3[%c0_32, %c0_33, %c6, %c0_34, %c0_35] : memref<1x1x16x4x4xf32, #tpu.memory_space<vmem>>, vector<1x1x1x4x4xf32>
    %30 = vector.shape_cast %29 : vector<1x1x1x4x4xf32> to vector<4x4xf32>
    %31 = vector.shape_cast %28 : vector<4x4xf32> to vector<1x1x1x4x4xf32>
    tpu.vector_store %arg3[%c0_32, %c0_33, %c6, %c0_34, %c0_35], %31 {strides = array<i32>} : memref<1x1x16x4x4xf32, #tpu.memory_space<vmem>>, vector<1x1x1x4x4xf32>,
    %32 = vector.extract_strided_slice %19 {offsets = [0, 12], sizes = [4, 4], strides = [1, 1]} : vector<4x16xf32> to vector<4x4xf32>
    %c0_36 = arith.constant 0 : index
    %c0_37 = arith.constant 0 : index
    %c7 = arith.constant 7 : index
    %c0_38 = arith.constant 0 : index
    %c0_39 = arith.constant 0 : index
    %33 = vector.load %arg3[%c0_36, %c0_37, %c7, %c0_38, %c0_39] : memref<1x1x16x4x4xf32, #tpu.memory_space<vmem>>, vector<1x1x1x4x4xf32>
    %34 = vector.shape_cast %33 : vector<1x1x1x4x4xf32> to vector<4x4xf32>
    %35 = vector.shape_cast %32 : vector<4x4xf32> to vector<1x1x1x4x4xf32>
    tpu.vector_store %arg3[%c0_36, %c0_37, %c7, %c0_38, %c0_39], %35 {strides = array<i32>} : memref<1x1x16x4x4xf32, #tpu.memory_space<vmem>>, vector<1x1x1x4x4xf32>,
    %c0_40 = arith.constant 0 : index
    %c0_41 = arith.constant 0 : index
    %c8 = arith.constant 8 : index
    %c0_42 = arith.constant 0 : index
    %36 = vector.load %arg2[%c0_40, %c0_41, %c8, %c0_42] : memref<1x1x16x16xf32, #tpu.memory_space<vmem>>, vector<1x1x4x16xf32>
    %37 = vector.shape_cast %36 : vector<1x1x4x16xf32> to vector<4x16xf32>
    %38 = vector.extract_strided_slice %37 {offsets = [0, 0], sizes = [4, 4], strides = [1, 1]} : vector<4x16xf32> to vector<4x4xf32>
    %c0_43 = arith.constant 0 : index
    %c0_44 = arith.constant 0 : index
    %c8_45 = arith.constant 8 : index
    %c0_46 = arith.constant 0 : index
    %c0_47 = arith.constant 0 : index
    %39 = vector.load %arg3[%c0_43, %c0_44, %c8_45, %c0_46, %c0_47] : memref<1x1x16x4x4xf32, #tpu.memory_space<vmem>>, vector<1x1x1x4x4xf32>
    %40 = vector.shape_cast %39 : vector<1x1x1x4x4xf32> to vector<4x4xf32>
    %41 = vector.shape_cast %38 : vector<4x4xf32> to vector<1x1x1x4x4xf32>
    tpu.vector_store %arg3[%c0_43, %c0_44, %c8_45, %c0_46, %c0_47], %41 {strides = array<i32>} : memref<1x1x16x4x4xf32, #tpu.memory_space<vmem>>, vector<1x1x1x4x4xf32>,
    %42 = vector.extract_strided_slice %37 {offsets = [0, 4], sizes = [4, 4], strides = [1, 1]} : vector<4x16xf32> to vector<4x4xf32>
    %c0_48 = arith.constant 0 : index
    %c0_49 = arith.constant 0 : index
    %c9 = arith.constant 9 : index
    %c0_50 = arith.constant 0 : index
    %c0_51 = arith.constant 0 : index
    %43 = vector.load %arg3[%c0_48, %c0_49, %c9, %c0_50, %c0_51] : memref<1x1x16x4x4xf32, #tpu.memory_space<vmem>>, vector<1x1x1x4x4xf32>
    %44 = vector.shape_cast %43 : vector<1x1x1x4x4xf32> to vector<4x4xf32>
    %45 = vector.shape_cast %42 : vector<4x4xf32> to vector<1x1x1x4x4xf32>
    tpu.vector_store %arg3[%c0_48, %c0_49, %c9, %c0_50, %c0_51], %45 {strides = array<i32>} : memref<1x1x16x4x4xf32, #tpu.memory_space<vmem>>, vector<1x1x1x4x4xf32>,
    %46 = vector.extract_strided_slice %37 {offsets = [0, 8], sizes = [4, 4], strides = [1, 1]} : vector<4x16xf32> to vector<4x4xf32>
    %c0_52 = arith.constant 0 : index
    %c0_53 = arith.constant 0 : index
    %c10 = arith.constant 10 : index
    %c0_54 = arith.constant 0 : index
    %c0_55 = arith.constant 0 : index
    %47 = vector.load %arg3[%c0_52, %c0_53, %c10, %c0_54, %c0_55] : memref<1x1x16x4x4xf32, #tpu.memory_space<vmem>>, vector<1x1x1x4x4xf32>
    %48 = vector.shape_cast %47 : vector<1x1x1x4x4xf32> to vector<4x4xf32>
    %49 = vector.shape_cast %46 : vector<4x4xf32> to vector<1x1x1x4x4xf32>
    tpu.vector_store %arg3[%c0_52, %c0_53, %c10, %c0_54, %c0_55], %49 {strides = array<i32>} : memref<1x1x16x4x4xf32, #tpu.memory_space<vmem>>, vector<1x1x1x4x4xf32>,
    %50 = vector.extract_strided_slice %37 {offsets = [0, 12], sizes = [4, 4], strides = [1, 1]} : vector<4x16xf32> to vector<4x4xf32>
    %c0_56 = arith.constant 0 : index
    %c0_57 = arith.constant 0 : index
    %c11 = arith.constant 11 : index
    %c0_58 = arith.constant 0 : index
    %c0_59 = arith.constant 0 : index
    %51 = vector.load %arg3[%c0_56, %c0_57, %c11, %c0_58, %c0_59] : memref<1x1x16x4x4xf32, #tpu.memory_space<vmem>>, vector<1x1x1x4x4xf32>
    %52 = vector.shape_cast %51 : vector<1x1x1x4x4xf32> to vector<4x4xf32>
    %53 = vector.shape_cast %50 : vector<4x4xf32> to vector<1x1x1x4x4xf32>
    tpu.vector_store %arg3[%c0_56, %c0_57, %c11, %c0_58, %c0_59], %53 {strides = array<i32>} : memref<1x1x16x4x4xf32, #tpu.memory_space<vmem>>, vector<1x1x1x4x4xf32>,
    %c0_60 = arith.constant 0 : index
    %c0_61 = arith.constant 0 : index
    %c12 = arith.constant 12 : index
    %c0_62 = arith.constant 0 : index
    %54 = vector.load %arg2[%c0_60, %c0_61, %c12, %c0_62] : memref<1x1x16x16xf32, #tpu.memory_space<vmem>>, vector<1x1x4x16xf32>
    %55 = vector.shape_cast %54 : vector<1x1x4x16xf32> to vector<4x16xf32>
    %56 = vector.extract_strided_slice %55 {offsets = [0, 0], sizes = [4, 4], strides = [1, 1]} : vector<4x16xf32> to vector<4x4xf32>
    %c0_63 = arith.constant 0 : index
    %c0_64 = arith.constant 0 : index
    %c12_65 = arith.constant 12 : index
    %c0_66 = arith.constant 0 : index
    %c0_67 = arith.constant 0 : index
    %57 = vector.load %arg3[%c0_63, %c0_64, %c12_65, %c0_66, %c0_67] : memref<1x1x16x4x4xf32, #tpu.memory_space<vmem>>, vector<1x1x1x4x4xf32>
    %58 = vector.shape_cast %57 : vector<1x1x1x4x4xf32> to vector<4x4xf32>
    %59 = vector.shape_cast %56 : vector<4x4xf32> to vector<1x1x1x4x4xf32>
    tpu.vector_store %arg3[%c0_63, %c0_64, %c12_65, %c0_66, %c0_67], %59 {strides = array<i32>} : memref<1x1x16x4x4xf32, #tpu.memory_space<vmem>>, vector<1x1x1x4x4xf32>,
    %60 = vector.extract_strided_slice %55 {offsets = [0, 4], sizes = [4, 4], strides = [1, 1]} : vector<4x16xf32> to vector<4x4xf32>
    %c0_68 = arith.constant 0 : index
    %c0_69 = arith.constant 0 : index
    %c13 = arith.constant 13 : index
    %c0_70 = arith.constant 0 : index
    %c0_71 = arith.constant 0 : index
    %61 = vector.load %arg3[%c0_68, %c0_69, %c13, %c0_70, %c0_71] : memref<1x1x16x4x4xf32, #tpu.memory_space<vmem>>, vector<1x1x1x4x4xf32>
    %62 = vector.shape_cast %61 : vector<1x1x1x4x4xf32> to vector<4x4xf32>
    %63 = vector.shape_cast %60 : vector<4x4xf32> to vector<1x1x1x4x4xf32>
    tpu.vector_store %arg3[%c0_68, %c0_69, %c13, %c0_70, %c0_71], %63 {strides = array<i32>} : memref<1x1x16x4x4xf32, #tpu.memory_space<vmem>>, vector<1x1x1x4x4xf32>,
    %64 = vector.extract_strided_slice %55 {offsets = [0, 8], sizes = [4, 4], strides = [1, 1]} : vector<4x16xf32> to vector<4x4xf32>
    %c0_72 = arith.constant 0 : index
    %c0_73 = arith.constant 0 : index
    %c14 = arith.constant 14 : index
    %c0_74 = arith.constant 0 : index
    %c0_75 = arith.constant 0 : index
    %65 = vector.load %arg3[%c0_72, %c0_73, %c14, %c0_74, %c0_75] : memref<1x1x16x4x4xf32, #tpu.memory_space<vmem>>, vector<1x1x1x4x4xf32>
    %66 = vector.shape_cast %65 : vector<1x1x1x4x4xf32> to vector<4x4xf32>
    %67 = vector.shape_cast %64 : vector<4x4xf32> to vector<1x1x1x4x4xf32>
    tpu.vector_store %arg3[%c0_72, %c0_73, %c14, %c0_74, %c0_75], %67 {strides = array<i32>} : memref<1x1x16x4x4xf32, #tpu.memory_space<vmem>>, vector<1x1x1x4x4xf32>,
    %68 = vector.extract_strided_slice %55 {offsets = [0, 12], sizes = [4, 4], strides = [1, 1]} : vector<4x16xf32> to vector<4x4xf32>
    %c0_76 = arith.constant 0 : index
    %c0_77 = arith.constant 0 : index
    %c15 = arith.constant 15 : index
    %c0_78 = arith.constant 0 : index
    %c0_79 = arith.constant 0 : index
    %69 = vector.load %arg3[%c0_76, %c0_77, %c15, %c0_78, %c0_79] : memref<1x1x16x4x4xf32, #tpu.memory_space<vmem>>, vector<1x1x1x4x4xf32>
    %70 = vector.shape_cast %69 : vector<1x1x1x4x4xf32> to vector<4x4xf32>
    %71 = vector.shape_cast %68 : vector<4x4xf32> to vector<1x1x1x4x4xf32>
    tpu.vector_store %arg3[%c0_76, %c0_77, %c15, %c0_78, %c0_79], %71 {strides = array<i32>} : memref<1x1x16x4x4xf32, #tpu.memory_space<vmem>>, vector<1x1x1x4x4xf32>,
    return
  }
  func.func @transform_0(%arg0: i32, %arg1: i32) -> (i32, i32, i32, i32) {
    %c0_i32 = arith.constant 0 : i32
    %c0_i32_0 = arith.constant 0 : i32
    %c0_i32_1 = arith.constant 0 : i32
    return %arg0, %arg1, %c0_i32, %c0_i32_0 : i32, i32, i32, i32
  }
  func.func @transform_1(%arg0: i32, %arg1: i32) -> (i32, i32, i32, i32, i32) {
    %c0_i32 = arith.constant 0 : i32
    %c0_i32_0 = arith.constant 0 : i32
    %c0_i32_1 = arith.constant 0 : i32
    %c0_i32_2 = arith.constant 0 : i32
    return %arg0, %arg1, %c0_i32, %c0_i32_0, %c0_i32_1 : i32, i32, i32, i32, i32
  }
}

</mosaic_0001>

<llo_original>
// kernel: tpu_custom_call.1
$region0: #{tpu_custom_call.1}
  #allocation0 [shape = 'u32[]', space=smem, size = 0x4, offset = 0x4, fixed_abs, tag = 'smem constant byte address 0x4 - core index']
  #allocation1 [shape = 'u32[72,128]{1,0:T(1,128)}', space=vmem, size = 0x9000, scoped, tag = 'internal scratch']
  %s0 = inlined_call_operand.hbm [shape: f32[2,4,16,16], index: 0, kind: input, shape index: {}]
  %s1 = inlined_call_operand.vmem [shape: f32[2,4,16,4,4], index: 1, kind: output, shape index: {}]
  %s2 = sld [smem:[#allocation0]]
  $region41: #{tpu_custom_call.1} parent=0
    _
  %s4 = ssub.s32 1, %s2
  %s5 = scalar_select 0, %s4, %s2
  $region1: #{tpu_custom_call.1} parent=0
    #allocation2 [shape = 'u8[16384]{0}', space=vmem, size = 0x4000, scoped, tag = 'input window, operand 0']
    #allocation3 [shape = 's32[2]{0}', space=sflag, size = 0x8, scoped, tag = 'scoped memory for tpu_custom_call.1']
    %6 = vsyncpa [#allocation3], 0
    %s7 = scalar_lea.sflag [#allocation3], 1
    %8 = vsyncpa %s7, 0
    loop: start=0, step=1, limit=10
    $region2: #{tpu_custom_call.1} parent=1 // loop_pre_header
      _
    $region3: #{tpu_custom_call.1} parent=1 // loop_header
      %s10 = sphi 0, %s14
      %p11 = scmp.ge.s32.totalorder %s10, 10
      %s17 = sphi 0, %s29
      %s18 = sphi 0, %s25
      %s19 = sphi 0, %s17
      %s20 = sphi 0, %s18
      %s21 = sphi 0, %s19
      %s22 = sphi 0, %s20
      %s34 = sphi 0, %s36
      %s37 = sphi 0, %s34
      %s38 = sphi 0, %s37
      %s54 = sphi 0, %s38
      %s62 = sphi 0, %s64
      %s65 = sphi 0, %s62
      %s66 = sphi 0, %s65
      %s82 = sphi 0, %s66
    $region4: #{tpu_custom_call.1} parent=1 // loop_header_branch
      %13 = sbr.rel (%p11) target = $region8
    $region5: #{tpu_custom_call.1} parent=1 // loop_body
      %s15 = ssub.s32 %s10, 1
      %s16 = ssub.s32 %s10, 2
      %s23 = sadd.s32 1, %s18
      %p24 = scmp.ge.s32.totalorder %s23, 4
      %s25 = scalar_select %p24, 0, %s23
      %s26 = sadd.s32 1, %s17
      %s27 = scalar_select %p24, %s26, %s17
      %p28 = scmp.ge.s32.totalorder %s27, 2
      %s29 = scalar_select %p28, 0, %s27
      %s30 = ssub.s32 %s17, %s29
      %s31 = ssub.s32 %s18, %s25
      %s32 = sor.u32 %s30, %s31
      %p33 = scmp.eq.s32.totalorder %s32, 0
      %s35 = sadd.s32 %s34, 1
      %s36 = scalar_select %p33, %s34, %s35
      %p39 = pneg %p33
      %p40 = scmp.eq.s32.totalorder %s10, 7
      %p41 = por %p39, %p40
      %p42 = scmp.ne.s32.totalorder %s34, %s37
      %p43 = scmp.eq.s32.totalorder %s10, 0
      %p44 = por %p42, %p43
      %p45 = scmp.ne.s32.totalorder %s34, %s37
      %p46 = scmp.eq.s32.totalorder %s15, 7
      %p47 = por %p45, %p46
      %p48 = scmp.ne.s32.totalorder %s37, %s38
      %p49 = scmp.eq.s32.totalorder %s15, 0
      %p50 = por %p48, %p49
      %p51 = scmp.ne.s32.totalorder %s37, %s38
      %p52 = scmp.eq.s32.totalorder %s16, 7
      %p53 = por %p51, %p52
      %p55 = scmp.ne.s32.totalorder %s38, %s54
      %p56 = scmp.eq.s32.totalorder %s16, 0
      %p57 = por %p55, %p56
      %s58 = ssub.s32 %s17, %s29
      %s59 = ssub.s32 %s18, %s25
      %s60 = sor.u32 %s58, %s59
      %p61 = scmp.eq.s32.totalorder %s60, 0
      %s63 = sadd.s32 %s62, 1
      %s64 = scalar_select %p61, %s62, %s63
      %p67 = pneg %p61
      %p68 = scmp.eq.s32.totalorder %s10, 7
      %p69 = por %p67, %p68
      %p70 = scmp.ne.s32.totalorder %s62, %s65
      %p71 = scmp.eq.s32.totalorder %s10, 0
      %p72 = por %p70, %p71
      %p73 = scmp.ne.s32.totalorder %s62, %s65
      %p74 = scmp.eq.s32.totalorder %s15, 7
      %p75 = por %p73, %p74
      %p76 = scmp.ne.s32.totalorder %s65, %s66
      %p77 = scmp.eq.s32.totalorder %s15, 0
      %p78 = por %p76, %p77
      %p79 = scmp.ne.s32.totalorder %s65, %s66
      %p80 = scmp.eq.s32.totalorder %s16, 7
      %p81 = por %p79, %p80
      %p83 = scmp.ne.s32.totalorder %s66, %s82
      %p84 = scmp.eq.s32.totalorder %s16, 0
      %p85 = por %p83, %p84
      %p86 = scmp.le.s32.totalorder 1, %s10
      %p87 = scmp.lt.s32.totalorder %s10, 9
      %p88 = pnand %p86, %p87
      %p89 = pneg %p88
      // Predicated region
      $region9: #{tpu_custom_call.1} parent=5 // pred_check
        _
      $region10: #{tpu_custom_call.1} parent=5 // pred_check_branch
        %91 = sbr.rel (%p88) target = $region12
      $region11: #{tpu_custom_call.1} parent=5 // pred_region
        %s92 = ssub.s32 %s10, 1
      $region12: #{tpu_custom_call.1} parent=5 // pred_fallthru
        _
      %p93 = scmp.lt.s32.totalorder %s10, 8
      // Predicated region
      $region13: #{tpu_custom_call.1} parent=5 // pred_check
        %p94 = pneg %p93
      $region14: #{tpu_custom_call.1} parent=5 // pred_check_branch
        %96 = sbr.rel (%p94) target = $region16
      $region15: #{tpu_custom_call.1} parent=5 // pred_region
        // Predicated region
        $region17: #{tpu_custom_call.1} parent=15 // pred_check
          %p97 = pneg %p44
        $region18: #{tpu_custom_call.1} parent=15 // pred_check_branch
          %99 = sbr.rel (%p97) target = $region20
        $region19: #{tpu_custom_call.1} parent=15 // pred_region
          %s100 = sand.u32 %s34, 1
          %s101 = scalar_lea.sflag [#allocation3], %s100
          %s102 = sand.u32 %s34, 1
          %s103 = smul.addr %s102, 16
          %s104 = scalar_lea.vmem [#allocation2], %s103
          %106 = vsyncadd %s101, 0
          %s107 = smul.addr %s18, 2
          %s108 = smul.addr %s17, 8
          %s109 = sadd.s32 %s107, %s108
          %s110 = smul.addr %s109, 8
          %s111 = scalar_lea.hbm %s0, %s110
          %s112 = sshll.u32 %s111, 4
          %s113 = int_to_ptr.hbm [resolvable:$true] %s112
          %s114 = sshll.u32 %s104, 4
          %s115 = int_to_ptr.vmem [resolvable:$true] %s114
          %120 = dma.hbm_to_vmem [thread:$0]  %s113, 256, %s115, %s101, 128, 128, 8
        $region20: #{tpu_custom_call.1} parent=15 // pred_fallthru
          _
      $region16: #{tpu_custom_call.1} parent=5 // pred_fallthru
        _
      %p121 = scmp.le.s32.totalorder 1, %s10
      %p122 = scmp.lt.s32.totalorder %s10, 9
      %p123 = pnand %p121, %p122
      %p124 = pneg %p123
      // Predicated region
      $region21: #{tpu_custom_call.1} parent=5 // pred_check
        _
      $region22: #{tpu_custom_call.1} parent=5 // pred_check_branch
        %126 = sbr.rel (%p123) target = $region24
      $region23: #{tpu_custom_call.1} parent=5 // pred_region
        %s127 = ssub.s32 %s10, 1
        %s128 = sand.u32 %s37, 1
        %s129 = scalar_lea.sflag [#allocation3], %s128
        %s130 = sand.u32 %s37, 1
        %s131 = smul.addr %s130, 16
        %s132 = scalar_lea.vmem [#allocation2], %s131
        // Predicated region
        $region25: #{tpu_custom_call.1} parent=23 // pred_check
          %p133 = pneg %p50
        $region26: #{tpu_custom_call.1} parent=23 // pred_check_branch
          %135 = sbr.rel (%p133) target = $region28
        $region27: #{tpu_custom_call.1} parent=23 // pred_region
          %137 = dma.done %s129, 256
        $region28: #{tpu_custom_call.1} parent=23 // pred_fallthru
          _
        %s138 = sand.u32 %s37, 1
        %s139 = scalar_lea.sflag [#allocation3], %s138
        %s140 = sand.u32 %s37, 1
        %s141 = smul.addr %s140, 16
        %s142 = scalar_lea.vmem [#allocation2], %s141
        %p143 = pneg %p50
        %p144 = pneg %p47
        %p145 = pneg %p78
        %p146 = pneg %p75
        %p147 = scmp.lt.s32.totalorder %s19, 1
        %s148 = scalar_select %p147, %s19, 1
        %p149 = scmp.lt.s32.totalorder %s20, 3
        %s150 = scalar_select %p149, %s20, 3
        %s151 = smul.addr %s150, 16
        %s152 = smul.addr %s148, 64
        %s153 = sadd.s32 %s151, %s152
        %s154 = smul.addr %s153, 4
        %s155 = scalar_lea.vmem %s1, %s154
        %p156 = scmp.lt.s32.totalorder %s19, 1
        %s157 = scalar_select %p156, %s19, 1
        %p158 = scmp.lt.s32.totalorder %s20, 3
        %s159 = scalar_select %p158, %s20, 3
        %s160 = smul.addr %s159, 16
        %s161 = smul.addr %s157, 64
        %s162 = sadd.s32 %s160, %s161
        %s163 = smul.addr %s162, 4
        %s164 = scalar_lea.vmem %s1, %s163
        %v165 = vld [vmem:[%s132] sm:$0xf]
        %vm166 = vcmask 27648
        %167 = vst.msk [vmem:[%s164] sm:$0xf] %vm166, %v165
        %169 = vrot.lane.b32.xlu0 %v165, 124
        %v170 = vpop.permute.xlu0 %169
        %s172 = scalar_lea.vmem %s164, 4
        %173 = vst.msk [vmem:[%s172] sm:$0xf] %vm166, %v170
        %174 = vrot.lane.b32.xlu0 %v165, 120
        %v175 = vpop.permute.xlu0 %174
        %s177 = scalar_lea.vmem %s164, 8
        %178 = vst.msk [vmem:[%s177] sm:$0xf] %vm166, %v175
        %179 = vrot.lane.b32.xlu0 %v165, 116
        %v180 = vpop.permute.xlu0 %179
        %s182 = scalar_lea.vmem %s164, 12
        %183 = vst.msk [vmem:[%s182] sm:$0xf] %vm166, %v180
        %v184 = vld [vmem:[%s132 + $0x4] sm:$0xf]
        %s185 = scalar_lea.vmem %s164, 16
        %186 = vst.msk [vmem:[%s185] sm:$0xf] %vm166, %v184
        %188 = vrot.lane.b32.xlu0 %v184, 124
        %v189 = vpop.permute.xlu0 %188
        %s191 = scalar_lea.vmem %s164, 20
        %192 = vst.msk [vmem:[%s191] sm:$0xf] %vm166, %v189
        %193 = vrot.lane.b32.xlu0 %v184, 120
        %v194 = vpop.permute.xlu0 %193
        %s196 = scalar_lea.vmem %s164, 24
        %197 = vst.msk [vmem:[%s196] sm:$0xf] %vm166, %v194
        %198 = vrot.lane.b32.xlu0 %v184, 116
        %v199 = vpop.permute.xlu0 %198
        %s201 = scalar_lea.vmem %s164, 28
        %202 = vst.msk [vmem:[%s201] sm:$0xf] %vm166, %v199
        %v203 = vld [vmem:[%s132 + $0x8] sm:$0xf]
        %s204 = scalar_lea.vmem %s164, 32
        %205 = vst.msk [vmem:[%s204] sm:$0xf] %vm166, %v203
        %207 = vrot.lane.b32.xlu0 %v203, 124
        %v208 = vpop.permute.xlu0 %207
        %s210 = scalar_lea.vmem %s164, 36
        %211 = vst.msk [vmem:[%s210] sm:$0xf] %vm166, %v208
        %212 = vrot.lane.b32.xlu0 %v203, 120
        %v213 = vpop.permute.xlu0 %212
        %s215 = scalar_lea.vmem %s164, 40
        %216 = vst.msk [vmem:[%s215] sm:$0xf] %vm166, %v213
        %217 = vrot.lane.b32.xlu0 %v203, 116
        %v218 = vpop.permute.xlu0 %217
        %s220 = scalar_lea.vmem %s164, 44
        %221 = vst.msk [vmem:[%s220] sm:$0xf] %vm166, %v218
        %v222 = vld [vmem:[%s132 + $0xc] sm:$0xf]
        %s223 = scalar_lea.vmem %s164, 48
        %224 = vst.msk [vmem:[%s223] sm:$0xf] %vm166, %v222
        %226 = vrot.lane.b32.xlu0 %v222, 124
        %v227 = vpop.permute.xlu0 %226
        %s229 = scalar_lea.vmem %s164, 52
        %230 = vst.msk [vmem:[%s229] sm:$0xf] %vm166, %v227
        %231 = vrot.lane.b32.xlu0 %v222, 120
        %v232 = vpop.permute.xlu0 %231
        %s234 = scalar_lea.vmem %s164, 56
        %235 = vst.msk [vmem:[%s234] sm:$0xf] %vm166, %v232
        %236 = vrot.lane.b32.xlu0 %v222, 116
        %v237 = vpop.permute.xlu0 %236
        %s239 = scalar_lea.vmem %s164, 60
        %240 = vst.msk [vmem:[%s239] sm:$0xf] %vm166, %v237
        %p241 = scmp.lt.s32.totalorder %s19, 1
        %s242 = scalar_select %p241, %s19, 1
        %p243 = scmp.lt.s32.totalorder %s20, 3
        %s244 = scalar_select %p243, %s20, 3
        %s245 = smul.addr %s244, 16
        %s246 = smul.addr %s242, 64
        %s247 = sadd.s32 %s245, %s246
        %s248 = smul.addr %s247, 4
        %s249 = scalar_lea.vmem %s1, %s248
        // Predicated region
        $region29: #{tpu_custom_call.1} parent=23 // pred_check
          %p250 = pneg %p75
        $region30: #{tpu_custom_call.1} parent=23 // pred_check_branch
          %252 = sbr.rel (%p250) target = $region32
        $region31: #{tpu_custom_call.1} parent=23 // pred_region
          _
        $region32: #{tpu_custom_call.1} parent=23 // pred_fallthru
          _
      $region24: #{tpu_custom_call.1} parent=5 // pred_fallthru
        _
      %p253 = scmp.le.s32.totalorder 2, %s10
      // Predicated region
      $region33: #{tpu_custom_call.1} parent=5 // pred_check
        %p254 = pneg %p253
      $region34: #{tpu_custom_call.1} parent=5 // pred_check_branch
        %256 = sbr.rel (%p254) target = $region36
      $region35: #{tpu_custom_call.1} parent=5 // pred_region
        %s257 = ssub.s32 %s10, 2
        // Predicated region
        $region37: #{tpu_custom_call.1} parent=35 // pred_check
          %p258 = pneg %p81
        $region38: #{tpu_custom_call.1} parent=35 // pred_check_branch
          %260 = sbr.rel (%p258) target = $region40
        $region39: #{tpu_custom_call.1} parent=35 // pred_region
          %p261 = scmp.lt.s32.totalorder %s21, 1
          %s262 = scalar_select %p261, %s21, 1
          %p263 = scmp.lt.s32.totalorder %s22, 3
          %s264 = scalar_select %p263, %s22, 3
          %s265 = smul.addr %s264, 16
          %s266 = smul.addr %s262, 64
          %s267 = sadd.s32 %s265, %s266
          %s268 = smul.addr %s267, 4
          %s269 = scalar_lea.vmem %s1, %s268
        $region40: #{tpu_custom_call.1} parent=35 // pred_fallthru
          _
      $region36: #{tpu_custom_call.1} parent=5 // pred_fallthru
        _
    $region6: #{tpu_custom_call.1} parent=1 // loop_footer
      %s14 = sadd.s32 1, %s10
    $region7: #{tpu_custom_call.1} parent=1 // loop_footer_branch
      %9 = sbr.rel target = $region3
    $region8: #{tpu_custom_call.1} parent=1 // loop_exit
      _
    %270 = vsyncpa [#allocation3], 1
    %s271 = scalar_lea.sflag [#allocation3], 1
    %272 = vsyncpa %s271, 1

</llo_original>
